<compile_context>
chip_gen: v5e
topology: v5e:2x2
jax: 0.10.0
libtpu: 0.0.40
codegen_flags: <defaults>
</compile_context>

<pallas_src>
import functools
import jax
import jax.numpy as jnp
from jax.experimental import pallas as pl
from jax.experimental.pallas import tpu as pltpu

K = 3          # conv kernel size
EPS = 1e-5     # BatchNorm eps


def _round_up(x, m):
    return (x + m - 1) // m * m


def _pick_batch_block(n, cap):
    """Largest divisor of n that is <= cap while keeping >= 2 grid steps (v7x)."""
    best = 1
    for d in range(1, min(cap, n) + 1):
        if n % d == 0 and (n == 1 or n // d >= 2):
            best = d
    return best


def residual_block_kernel(x_ref, w1c_ref, w2_ref, mask_ref, t1_ref, t2_ref, o_ref,
                          *, H, W, Cout, Cp, NB):
    """Residual block for a block of NB images in (C, H*W) layout (spatial on lanes).

    x_ref   : (NB, Cp, H*W)        f32 input, in-channels zero-padded to Cp (mult of 8)
    w1c_ref : (2*Cout, 9*Cp)       bf16: [conv1 * BN1-scale ; shortcut @ center tap]
    w2_ref  : (Cout, 9*Cp)         bf16: conv2 * BN2-scale
    mask_ref: (9*Cp, H*W)          f32 multiplicative 'same'-padding border mask
    t1/t2   : (Cout, 1)            f32 folded conv-bias + BN shift
    o_ref   : (NB, Cout, H*W)      bf16 output (lane-dense: H*W multiple of 128)
    """
    HW = H * W
    taps = [(dy, dx) for dy in (-1, 0, 1) for dx in (-1, 0, 1)]

    # Hoisted broadcasts (JAX does not CSE broadcast_in_dim inside the batch loop).
    t1 = jnp.broadcast_to(t1_ref[...], (Cout, HW))
    t2 = jnp.broadcast_to(t2_ref[...], (Cout, HW))

    def im2col(v):
        """(Cp, HW) f32 -> (9*Cp, HW) bf16 stack: 9 XLU rolls, aligned sublane concat,
        one hoisted-mask multiply, one f32->bf16 cast."""
        chunks = []
        for dy, dx in taps:
            s = dy * W + dx
            chunks.append(pltpu.roll(v, (-s) % HW, axis=1) if s != 0 else v)
        stk = jnp.concatenate(chunks, axis=0)            # each chunk is 8-row aligned
        return (stk * mask_ref[...]).astype(jnp.bfloat16)

    for b in range(NB):                                   # NB is small and static
        X = x_ref[b]                                      # (Cp, HW) f32

        # conv1 (+ folded BN1 scale) AND the shortcut Linear in a single MXU pass.
        p1 = jnp.dot(w1c_ref[...], im2col(X),
                     preferred_element_type=jnp.float32)  # (2*Cout, HW)
        h1 = jnp.maximum(p1[:Cout] + t1, 0.0)             # +BN1 shift, ReLU; dropout=id
        sc = p1[Cout:]                                    # shortcut rows (bias == 0)

        if Cout == Cp:
            h1p = h1
        else:                                             # keep tap chunks 8-row aligned
            h1p = jnp.concatenate(
                [h1, jnp.zeros((Cp - Cout, HW), jnp.float32)], axis=0)

        # conv2 (+ folded BN2 scale) as one MXU pass, then shift + residual + ReLU.
        y2 = jnp.dot(w2_ref[...], im2col(h1p),
                     preferred_element_type=jnp.float32) + t2
        o_ref[b] = jnp.maximum(y2 + sc, 0.0).astype(o_ref.dtype)


def residual_block_pallas(x_nchw, params, *, max_batch_block=4):
    (w1, b1, g1, be1, m1, v1, w2, b2, g2, be2, m2, v2, w_lin) = params

    N, Cin, H, W = x_nchw.shape
    Cout = w1.shape[0]
    HW = H * W
    assert HW % 128 == 0, "flattened spatial axis must be lane-dense"

    Cp = max(_round_up(Cin, 8), _round_up(Cout, 8))       # per-tap sublane chunk size

    # BatchNorm (eval): fold the SCALE into the conv weights, keep only the SHIFT.
    s1 = g1 / jnp.sqrt(v1 + EPS)
    t1 = (b1 - m1) * s1 + be1
    s2 = g2 / jnp.sqrt(v2 + EPS)
    t2 = (b2 - m2) * s2 + be2

    def tap_major(w_oihw, scale, cin):
        """(O, I, 3, 3) * scale_o -> (Cout, 9*Cp) with column index t*Cp + c."""
        w = w_oihw * scale[:, None, None, None]
        w = jnp.transpose(w, (2, 3, 0, 1)).reshape(K * K, Cout, cin)   # [t, o, c]
        w = jnp.pad(w, ((0, 0), (0, 0), (0, Cp - cin)))                # pad in-ch to Cp
        return jnp.transpose(w, (1, 0, 2)).reshape(Cout, K * K * Cp)

    w1_im = tap_major(w1, s1, Cin)
    w2_im = tap_major(w2, s2, Cout)

    # Shortcut Linear fused into conv1: Cout extra rows, center-tap columns only.
    center = (K * K) // 2
    wsc = jnp.pad(w_lin, ((0, 0), (0, Cp - Cin)))                      # (Cout, Cp)
    sc_rows = jnp.zeros((Cout, K * K * Cp), jnp.float32)
    sc_rows = sc_rows.at[:, center * Cp:(center + 1) * Cp].set(wsc)
    w1c = jnp.concatenate([w1_im, sc_rows], axis=0).astype(jnp.bfloat16)  # (2*Cout, 9*Cp)
    w2b = w2_im.astype(jnp.bfloat16)                                      # (Cout, 9*Cp)

    # Hoisted multiplicative 'same'-padding border mask (computed once, DMA'd in).
    ys = jnp.arange(HW, dtype=jnp.int32) // W
    xs = jnp.arange(HW, dtype=jnp.int32) % W
    taps = [(dy, dx) for dy in (-1, 0, 1) for dx in (-1, 0, 1)]
    m = jnp.stack([((ys + dy >= 0) & (ys + dy < H) & (xs + dx >= 0) & (xs + dx < W))
                   for dy, dx in taps]).astype(jnp.float32)             # (9, HW)
    mask = jnp.broadcast_to(m[:, None, :], (K * K, Cp, HW)).reshape(K * K * Cp, HW)

    # NCHW -> (N, Cp, HW): free reshape + tiny channel zero-pad (no spatial pads,
    # no transposes).
    x_flat = jnp.pad(x_nchw.reshape(N, Cin, HW), ((0, 0), (0, Cp - Cin), (0, 0)))

    NB = _pick_batch_block(N, max_batch_block)
    grid = (N // NB,)

    kernel = functools.partial(residual_block_kernel,
                               H=H, W=W, Cout=Cout, Cp=Cp, NB=NB)

    out_flat = pl.pallas_call(
        kernel,
        out_shape=jax.ShapeDtypeStruct((N, Cout, HW), jnp.bfloat16),
        grid_spec=pltpu.PrefetchScalarGridSpec(
            num_scalar_prefetch=0,
            grid=grid,
            in_specs=[
                pl.BlockSpec((NB, Cp, HW), lambda b: (b, 0, 0)),
                pl.BlockSpec((2 * Cout, K * K * Cp), lambda b: (0, 0)),
                pl.BlockSpec((Cout, K * K * Cp), lambda b: (0, 0)),
                pl.BlockSpec((K * K * Cp, HW), lambda b: (0, 0)),
                pl.BlockSpec((Cout, 1), lambda b: (0, 0)),
                pl.BlockSpec((Cout, 1), lambda b: (0, 0)),
            ],
            out_specs=pl.BlockSpec((NB, Cout, HW), lambda b: (b, 0, 0)),
        ),
        compiler_params=pltpu.CompilerParams(
            dimension_semantics=("parallel",),
            vmem_limit_bytes=32 * 1024 * 1024),
    )(x_flat, w1c, w2b, mask, t1.reshape(Cout, 1), t2.reshape(Cout, 1))

    # Kernel HBM writeback is bf16; cast back to f32 for parity with the f32 module.
    return out_flat.reshape(N, Cout, H, W).astype(jnp.float32)


def residual_block_reference(x, params):
    """Pure-JAX NCHW reference (for correctness check only)."""
    (w1, b1, g1, be1, m1, v1, w2, b2, g2, be2, m2, v2, w_lin) = params

    def conv(h, w, b):
        y = jax.lax.conv_general_dilated(
            h, w, (1, 1), "SAME",
            dimension_numbers=("NCHW", "OIHW", "NCHW"),
            precision=jax.lax.Precision.HIGHEST)
        return y + b[None, :, None, None]

    def bn(h, g, be, m, v):
        return ((h - m[None, :, None, None])
                / jnp.sqrt(v[None, :, None, None] + EPS)
                * g[None, :, None, None] + be[None, :, None, None])

    h = jax.nn.relu(bn(conv(x, w1, b1), g1, be1, m1, v1))      # dropout = id (eval)
    h = bn(conv(h, w2, b2), g2, be2, m2, v2)
    sc = jnp.einsum("nchw,oc->nohw", x, w_lin,
                    precision=jax.lax.Precision.HIGHEST)       # Linear shortcut, bias 0
    return jax.nn.relu(h + sc)


def make_params(key, Cin, Cout):
    ks = jax.random.split(key, 13)

    def kaiming(k, shape, fan_in):
        return jax.random.normal(k, shape, jnp.float32) * jnp.sqrt(2.0 / fan_in)

    w1 = kaiming(ks[0], (Cout, Cin, K, K), Cin * K * K)
    b1 = 0.1 * jax.random.normal(ks[1], (Cout,), jnp.float32)
    w2 = kaiming(ks[2], (Cout, Cout, K, K), Cout * K * K)
    b2 = 0.1 * jax.random.normal(ks[3], (Cout,), jnp.float32)
    g1 = jax.random.uniform(ks[4], (Cout,), jnp.float32, 0.5, 1.5)
    be1 = 0.1 * jax.random.normal(ks[5], (Cout,), jnp.float32)
    m1 = 0.1 * jax.random.normal(ks[6], (Cout,), jnp.float32)
    v1 = jax.random.uniform(ks[7], (Cout,), jnp.float32, 0.5, 1.5)
    g2 = jax.random.uniform(ks[8], (Cout,), jnp.float32, 0.5, 1.5)
    be2 = 0.1 * jax.random.normal(ks[9], (Cout,), jnp.float32)
    m2 = 0.1 * jax.random.normal(ks[10], (Cout,), jnp.float32)
    v2 = jax.random.uniform(ks[11], (Cout,), jnp.float32, 0.5, 1.5)
    w_lin = kaiming(ks[12], (Cout, Cin), Cin)   # torch.nn.init.kaiming_normal_, bias = 0
    return (w1, b1, g1, be1, m1, v1, w2, b2, g2, be2, m2, v2, w_lin)


if __name__ == "__main__":
    N, Cin, Cout, H, W = 2, 4, 8, 16, 16   # in_channels != out_channels -> shortcut used

    root = jax.random.PRNGKey(0)
    k_params, k_x = jax.random.split(root)
    params = make_params(k_params, Cin, Cout)
    x = jax.random.normal(k_x, (N, Cin, H, W), jnp.float32)

    out = jax.block_until_ready(residual_block_pallas(x, params))
    ref = jax.block_until_ready(residual_block_reference(x, params))

    assert out.shape == (N, Cout, H, W), out.shape
    # bf16 MXU operands + bf16 output store vs Precision.HIGHEST f32 reference
    # -> loosened tolerance.
    assert jnp.allclose(out, ref, atol=1.5e-1, rtol=5e-2), (
        float(jnp.max(jnp.abs(out - ref))))

    print("KERNEL_OK")
</pallas_src>

<mosaic_0001>
module attributes {stable_mosaic.version = 11 : i64} {
  func.func @residual_block_kernel(%arg0: i32, %arg1: memref<1x8x256xf32, #tpu.memory_space<vmem>>, %arg2: memref<16x72xbf16, #tpu.memory_space<vmem>>, %arg3: memref<8x72xbf16, #tpu.memory_space<vmem>>, %arg4: memref<72x256xf32, #tpu.memory_space<vmem>>, %arg5: memref<8x1xf32, #tpu.memory_space<vmem>>, %arg6: memref<8x1xf32, #tpu.memory_space<vmem>>, %arg7: memref<1x8x256xbf16, #tpu.memory_space<vmem>>) attributes {dimension_semantics = [#tpu.dimension_semantics<parallel>], iteration_bounds = array<i64: 2>, scalar_prefetch = 0 : i64, scratch_operands = 0 : i64, tpu.core_type = #tpu.core_type<tc>, window_params = [{transform_indices = @transform_0, window_bounds = array<i64: 1, 8, 256>}, {pipeline_mode = #tpu.pipeline_mode<synchronous>, transform_indices = @transform_1, window_bounds = array<i64: 16, 72>}, {pipeline_mode = #tpu.pipeline_mode<synchronous>, transform_indices = @transform_2, window_bounds = array<i64: 8, 72>}, {pipeline_mode = #tpu.pipeline_mode<synchronous>, transform_indices = @transform_3, window_bounds = array<i64: 72, 256>}, {pipeline_mode = #tpu.pipeline_mode<synchronous>, transform_indices = @transform_4, window_bounds = array<i64: 8, 1>}, {pipeline_mode = #tpu.pipeline_mode<synchronous>, transform_indices = @transform_5, window_bounds = array<i64: 8, 1>}, {transform_indices = @transform_6, window_bounds = array<i64: 1, 8, 256>}]} {
    %c0 = arith.constant 0 : index
    %c0_0 = arith.constant 0 : index
    %0 = vector.load %arg5[%c0, %c0_0] : memref<8x1xf32, #tpu.memory_space<vmem>>, vector<8x1xf32>
    %1 = vector.shape_cast %0 : vector<8x1xf32> to vector<8x1xf32>
    %2 = vector.broadcast %1 : vector<8x1xf32> to vector<8x256xf32>
    %c0_1 = arith.constant 0 : index
    %c0_2 = arith.constant 0 : index
    %3 = vector.load %arg6[%c0_1, %c0_2] : memref<8x1xf32, #tpu.memory_space<vmem>>, vector<8x1xf32>
    %4 = vector.shape_cast %3 : vector<8x1xf32> to vector<8x1xf32>
    %5 = vector.broadcast %4 : vector<8x1xf32> to vector<8x256xf32>
    %c0_3 = arith.constant 0 : index
    %c0_4 = arith.constant 0 : index
    %c0_5 = arith.constant 0 : index
    %6 = vector.load %arg1[%c0_3, %c0_4, %c0_5] : memref<1x8x256xf32, #tpu.memory_space<vmem>>, vector<1x8x256xf32>
    %7 = vector.shape_cast %6 : vector<1x8x256xf32> to vector<8x256xf32>
    %c0_6 = arith.constant 0 : index
    %c0_7 = arith.constant 0 : index
    %8 = vector.load %arg2[%c0_6, %c0_7] : memref<16x72xbf16, #tpu.memory_space<vmem>>, vector<16x72xbf16>
    %c17_i32 = arith.constant 17 : i32
    %9 = tpu.dynamic_rotate %7 by %c17_i32 dim 1 : vector<8x256xf32>, i32 -> vector<8x256xf32>
    %c16_i32 = arith.constant 16 : i32
    %10 = tpu.dynamic_rotate %7 by %c16_i32 dim 1 : vector<8x256xf32>, i32 -> vector<8x256xf32>
    %c15_i32 = arith.constant 15 : i32
    %11 = tpu.dynamic_rotate %7 by %c15_i32 dim 1 : vector<8x256xf32>, i32 -> vector<8x256xf32>
    %c1_i32 = arith.constant 1 : i32
    %12 = tpu.dynamic_rotate %7 by %c1_i32 dim 1 : vector<8x256xf32>, i32 -> vector<8x256xf32>
    %c255_i32 = arith.constant 255 : i32
    %13 = tpu.dynamic_rotate %7 by %c255_i32 dim 1 : vector<8x256xf32>, i32 -> vector<8x256xf32>
    %c241_i32 = arith.constant 241 : i32
    %14 = tpu.dynamic_rotate %7 by %c241_i32 dim 1 : vector<8x256xf32>, i32 -> vector<8x256xf32>
    %c240_i32 = arith.constant 240 : i32
    %15 = tpu.dynamic_rotate %7 by %c240_i32 dim 1 : vector<8x256xf32>, i32 -> vector<8x256xf32>
    %c239_i32 = arith.constant 239 : i32
    %16 = tpu.dynamic_rotate %7 by %c239_i32 dim 1 : vector<8x256xf32>, i32 -> vector<8x256xf32>
    %17 = tpu.concatenate %9, %10, %11, %12, %7, %13, %14, %15, %16 in 0 : vector<8x256xf32>, vector<8x256xf32>, vector<8x256xf32>, vector<8x256xf32>, vector<8x256xf32>, vector<8x256xf32>, vector<8x256xf32>, vector<8x256xf32>, vector<8x256xf32> -> vector<72x256xf32>
    %c0_8 = arith.constant 0 : index
    %c0_9 = arith.constant 0 : index
    %18 = vector.load %arg4[%c0_8, %c0_9] : memref<72x256xf32, #tpu.memory_space<vmem>>, vector<72x256xf32>
    %19 = arith.mulf %17, %18 : vector<72x256xf32>
    %20 = arith.truncf %19 : vector<72x256xf32> to vector<72x256xbf16>
    %cst = arith.constant dense<0.000000e+00> : vector<16x256xf32>
    %21 = tpu.matmul %8, %20, %cst {dimension_numbers = #tpu.dot_dimension_numbers<[1], [0], [0], [1], [0, 0, 1, 1], [], []>} : vector<16x72xbf16>, vector<72x256xbf16>, vector<16x256xf32> -> vector<16x256xf32>
    %22 = vector.extract_strided_slice %21 {offsets = [0, 0], sizes = [8, 256], strides = [1, 1]} : vector<16x256xf32> to vector<8x256xf32>
    %23 = arith.addf %22, %2 : vector<8x256xf32>
    %cst_10 = arith.constant 0.000000e+00 : f32
    %24 = vector.broadcast %cst_10 : f32 to vector<8x256xf32>
    %25 = arith.maximumf %23, %24 : vector<8x256xf32>
    %26 = vector.extract_strided_slice %21 {offsets = [8, 0], sizes = [8, 256], strides = [1, 1]} : vector<16x256xf32> to vector<8x256xf32>
    %c0_11 = arith.constant 0 : index
    %c0_12 = arith.constant 0 : index
    %27 = vector.load %arg3[%c0_11, %c0_12] : memref<8x72xbf16, #tpu.memory_space<vmem>>, vector<8x72xbf16>
    %c17_i32_13 = arith.constant 17 : i32
    %28 = tpu.dynamic_rotate %25 by %c17_i32_13 dim 1 : vector<8x256xf32>, i32 -> vector<8x256xf32>
    %c16_i32_14 = arith.constant 16 : i32
    %29 = tpu.dynamic_rotate %25 by %c16_i32_14 dim 1 : vector<8x256xf32>, i32 -> vector<8x256xf32>
    %c15_i32_15 = arith.constant 15 : i32
    %30 = tpu.dynamic_rotate %25 by %c15_i32_15 dim 1 : vector<8x256xf32>, i32 -> vector<8x256xf32>
    %c1_i32_16 = arith.constant 1 : i32
    %31 = tpu.dynamic_rotate %25 by %c1_i32_16 dim 1 : vector<8x256xf32>, i32 -> vector<8x256xf32>
    %c255_i32_17 = arith.constant 255 : i32
    %32 = tpu.dynamic_rotate %25 by %c255_i32_17 dim 1 : vector<8x256xf32>, i32 -> vector<8x256xf32>
    %c241_i32_18 = arith.constant 241 : i32
    %33 = tpu.dynamic_rotate %25 by %c241_i32_18 dim 1 : vector<8x256xf32>, i32 -> vector<8x256xf32>
    %c240_i32_19 = arith.constant 240 : i32
    %34 = tpu.dynamic_rotate %25 by %c240_i32_19 dim 1 : vector<8x256xf32>, i32 -> vector<8x256xf32>
    %c239_i32_20 = arith.constant 239 : i32
    %35 = tpu.dynamic_rotate %25 by %c239_i32_20 dim 1 : vector<8x256xf32>, i32 -> vector<8x256xf32>
    %36 = tpu.concatenate %28, %29, %30, %31, %25, %32, %33, %34, %35 in 0 : vector<8x256xf32>, vector<8x256xf32>, vector<8x256xf32>, vector<8x256xf32>, vector<8x256xf32>, vector<8x256xf32>, vector<8x256xf32>, vector<8x256xf32>, vector<8x256xf32> -> vector<72x256xf32>
    %c0_21 = arith.constant 0 : index
    %c0_22 = arith.constant 0 : index
    %37 = vector.load %arg4[%c0_21, %c0_22] : memref<72x256xf32, #tpu.memory_space<vmem>>, vector<72x256xf32>
    %38 = arith.mulf %36, %37 : vector<72x256xf32>
    %39 = arith.truncf %38 : vector<72x256xf32> to vector<72x256xbf16>
    %cst_23 = arith.constant dense<0.000000e+00> : vector<8x256xf32>
    %40 = tpu.matmul %27, %39, %cst_23 {dimension_numbers = #tpu.dot_dimension_numbers<[1], [0], [0], [1], [0, 0, 1, 1], [], []>} : vector<8x72xbf16>, vector<72x256xbf16>, vector<8x256xf32> -> vector<8x256xf32>
    %41 = arith.addf %40, %5 : vector<8x256xf32>
    %42 = arith.addf %41, %26 : vector<8x256xf32>
    %cst_24 = arith.constant 0.000000e+00 : f32
    %43 = vector.broadcast %cst_24 : f32 to vector<8x256xf32>
    %44 = arith.maximumf %42, %43 : vector<8x256xf32>
    %45 = arith.truncf %44 : vector<8x256xf32> to vector<8x256xbf16>
    %c0_25 = arith.constant 0 : index
    %c0_26 = arith.constant 0 : index
    %c0_27 = arith.constant 0 : index
    %46 = vector.load %arg7[%c0_25, %c0_26, %c0_27] : memref<1x8x256xbf16, #tpu.memory_space<vmem>>, vector<1x8x256xbf16>
    %47 = vector.shape_cast %46 : vector<1x8x256xbf16> to vector<8x256xbf16>
    %48 = vector.shape_cast %45 : vector<8x256xbf16> to vector<1x8x256xbf16>
    tpu.vector_store %arg7[%c0_25, %c0_26, %c0_27], %48 {strides = array<i32>} : memref<1x8x256xbf16, #tpu.memory_space<vmem>>, vector<1x8x256xbf16>,
    return
  }
  func.func @transform_0(%arg0: i32) -> (i32, i32, i32) {
    %c0_i32 = arith.constant 0 : i32
    %c0_i32_0 = arith.constant 0 : i32
    %c0_i32_1 = arith.constant 0 : i32
    return %arg0, %c0_i32, %c0_i32_0 : i32, i32, i32
  }
  func.func @transform_1(%arg0: i32) -> (i32, i32) {
    %c0_i32 = arith.constant 0 : i32
    %c0_i32_0 = arith.constant 0 : i32
    %c0_i32_1 = arith.constant 0 : i32
    return %c0_i32, %c0_i32_0 : i32, i32
  }
  func.func @transform_2(%arg0: i32) -> (i32, i32) {
    %c0_i32 = arith.constant 0 : i32
    %c0_i32_0 = arith.constant 0 : i32
    %c0_i32_1 = arith.constant 0 : i32
    return %c0_i32, %c0_i32_0 : i32, i32
  }
  func.func @transform_3(%arg0: i32) -> (i32, i32) {
    %c0_i32 = arith.constant 0 : i32
    %c0_i32_0 = arith.constant 0 : i32
    %c0_i32_1 = arith.constant 0 : i32
    return %c0_i32, %c0_i32_0 : i32, i32
  }
  func.func @transform_4(%arg0: i32) -> (i32, i32) {
    %c0_i32 = arith.constant 0 : i32
    %c0_i32_0 = arith.constant 0 : i32
    %c0_i32_1 = arith.constant 0 : i32
    return %c0_i32, %c0_i32_0 : i32, i32
  }
  func.func @transform_5(%arg0: i32) -> (i32, i32) {
    %c0_i32 = arith.constant 0 : i32
    %c0_i32_0 = arith.constant 0 : i32
    %c0_i32_1 = arith.constant 0 : i32
    return %c0_i32, %c0_i32_0 : i32, i32
  }
  func.func @transform_6(%arg0: i32) -> (i32, i32, i32) {
    %c0_i32 = arith.constant 0 : i32
    %c0_i32_0 = arith.constant 0 : i32
    %c0_i32_1 = arith.constant 0 : i32
    return %arg0, %c0_i32, %c0_i32_0 : i32, i32, i32
  }
}

</mosaic_0001>

<llo_original>
// kernel: tpu_custom_call.1
$region0: #{tpu_custom_call.1}
  #allocation0 [shape = 'u32[]', space=smem, size = 0x4, offset = 0x4, fixed_abs, tag = 'smem constant byte address 0x4 - core index']
  #allocation1 [shape = 'u32[72,128]{1,0:T(1,128)}', space=vmem, size = 0x9000, scoped, tag = 'internal scratch']
  %s0 = inlined_call_operand.hbm [shape: f32[2,8,256], index: 0, kind: input, shape index: {}]
  %s1 = inlined_call_operand.vmem [shape: bf16[16,72], index: 1, kind: input, shape index: {}]
  %s2 = inlined_call_operand.vmem [shape: bf16[8,72], index: 2, kind: input, shape index: {}]
  %s3 = inlined_call_operand.hbm [shape: f32[72,256], index: 3, kind: input, shape index: {}]
  %s4 = inlined_call_operand.vmem [shape: f32[8,1], index: 4, kind: input, shape index: {}]
  %s5 = inlined_call_operand.vmem [shape: f32[8,1], index: 5, kind: input, shape index: {}]
  %s6 = inlined_call_operand.hbm [shape: bf16[2,8,256], index: 6, kind: output, shape index: {}]
  %s7 = sld [smem:[#allocation0]]
  $region65: #{tpu_custom_call.1} parent=0
    _
  %s9 = ssub.s32 1, %s7
  %s10 = scalar_select 0, %s9, %s7
  $region1: #{tpu_custom_call.1} parent=0
    #allocation2 [shape = 'u8[16384]{0}', space=vmem, size = 0x4000, scoped, tag = 'input window, operand 0']
    #allocation3 [shape = 's32[2]{0}', space=sflag, size = 0x8, scoped, tag = 'scoped memory for tpu_custom_call.1']
    #allocation4 [shape = 's32[2]{0}', space=sflag, size = 0x8, scoped, tag = 'scoped memory for tpu_custom_call.1']
    #allocation5 [shape = 'u8[73728]{0}', space=vmem, size = 0x12000, scoped, tag = 'input window, operand 3, single buffered']
    #allocation6 [shape = 's32[1]{0}', space=sflag, size = 0x4, scoped, tag = 'scoped memory for tpu_custom_call.1']
    #allocation7 [shape = 'u8[8192]{0}', space=vmem, size = 0x2000, scoped, tag = 'output window, operand 0']
    %11 = vsyncpa [#allocation3], 0
    %s12 = scalar_lea.sflag [#allocation3], 1
    %13 = vsyncpa %s12, 0
    %14 = vsyncpa [#allocation6], 0
    %15 = vsyncpa [#allocation4], 0
    %s16 = scalar_lea.sflag [#allocation4], 1
    %17 = vsyncpa %s16, 0
    loop: start=0, step=1, limit=4
    $region2: #{tpu_custom_call.1} parent=1 // loop_pre_header
      _
    $region3: #{tpu_custom_call.1} parent=1 // loop_header
      %s19 = sphi 0, %s23
      %p20 = scmp.ge.s32.totalorder %s19, 4
      %s29 = sphi 0, %s31
      %s32 = sphi 0, %s29
      %s33 = sphi 0, %s32
      %s49 = sphi 0, %s33
      %s53 = sphi 0, %s53
      %s55 = sphi 0, %s53
      %s56 = sphi 0, %s55
      %s70 = sphi 0, %s56
      %s74 = sphi 0, %s74
      %s76 = sphi 0, %s74
      %s77 = sphi 0, %s76
      %s91 = sphi 0, %s77
      %s95 = sphi 0, %s95
      %s97 = sphi 0, %s95
      %s98 = sphi 0, %s97
      %s112 = sphi 0, %s98
      %s116 = sphi 0, %s116
      %s118 = sphi 0, %s116
      %s119 = sphi 0, %s118
      %s133 = sphi 0, %s119
      %s137 = sphi 0, %s137
      %s139 = sphi 0, %s137
      %s140 = sphi 0, %s139
      %s154 = sphi 0, %s140
      %s160 = sphi 0, %s162
      %s163 = sphi 0, %s160
      %s164 = sphi 0, %s163
      %s180 = sphi 0, %s164
    $region4: #{tpu_custom_call.1} parent=1 // loop_header_branch
      %22 = sbr.rel (%p20) target = $region8
    $region5: #{tpu_custom_call.1} parent=1 // loop_body
      %s24 = ssub.s32 %s19, 1
      %s25 = ssub.s32 %s19, 2
      %s26 = sadd.s32 %s19, 1
      %s27 = ssub.s32 %s19, %s26
      %p28 = scmp.eq.s32.totalorder %s27, 0
      %s30 = sadd.s32 %s29, 1
      %s31 = scalar_select %p28, %s29, %s30
      %p34 = pneg %p28
      %p35 = scmp.eq.s32.totalorder %s19, 1
      %p36 = por %p34, %p35
      %p37 = scmp.ne.s32.totalorder %s29, %s32
      %p38 = scmp.eq.s32.totalorder %s19, 0
      %p39 = por %p37, %p38
      %p40 = scmp.ne.s32.totalorder %s29, %s32
      %p41 = scmp.eq.s32.totalorder %s24, 1
      %p42 = por %p40, %p41
      %p43 = scmp.ne.s32.totalorder %s32, %s33
      %p44 = scmp.eq.s32.totalorder %s24, 0
      %p45 = por %p43, %p44
      %p46 = scmp.ne.s32.totalorder %s32, %s33
      %p47 = scmp.eq.s32.totalorder %s25, 1
      %p48 = por %p46, %p47
      %p50 = scmp.ne.s32.totalorder %s33, %s49
      %p51 = scmp.eq.s32.totalorder %s25, 0
      %p52 = por %p50, %p51
      %s54 = sadd.s32 %s53, 1
      %p57 = scmp.eq.s32.totalorder %s19, 1
      %p58 = scmp.ne.s32.totalorder %s53, %s55
      %p59 = scmp.eq.s32.totalorder %s19, 0
      %p60 = por %p58, %p59
      %p61 = scmp.ne.s32.totalorder %s53, %s55
      %p62 = scmp.eq.s32.totalorder %s24, 1
      %p63 = por %p61, %p62
      %p64 = scmp.ne.s32.totalorder %s55, %s56
      %p65 = scmp.eq.s32.totalorder %s24, 0
      %p66 = por %p64, %p65
      %p67 = scmp.ne.s32.totalorder %s55, %s56
      %p68 = scmp.eq.s32.totalorder %s25, 1
      %p69 = por %p67, %p68
      %p71 = scmp.ne.s32.totalorder %s56, %s70
      %p72 = scmp.eq.s32.totalorder %s25, 0
      %p73 = por %p71, %p72
      %s75 = sadd.s32 %s74, 1
      %p78 = scmp.eq.s32.totalorder %s19, 1
      %p79 = scmp.ne.s32.totalorder %s74, %s76
      %p80 = scmp.eq.s32.totalorder %s19, 0
      %p81 = por %p79, %p80
      %p82 = scmp.ne.s32.totalorder %s74, %s76
      %p83 = scmp.eq.s32.totalorder %s24, 1
      %p84 = por %p82, %p83
      %p85 = scmp.ne.s32.totalorder %s76, %s77
      %p86 = scmp.eq.s32.totalorder %s24, 0
      %p87 = por %p85, %p86
      %p88 = scmp.ne.s32.totalorder %s76, %s77
      %p89 = scmp.eq.s32.totalorder %s25, 1
      %p90 = por %p88, %p89
      %p92 = scmp.ne.s32.totalorder %s77, %s91
      %p93 = scmp.eq.s32.totalorder %s25, 0
      %p94 = por %p92, %p93
      %s96 = sadd.s32 %s95, 1
      %p99 = scmp.eq.s32.totalorder %s19, 1
      %p100 = scmp.ne.s32.totalorder %s95, %s97
      %p101 = scmp.eq.s32.totalorder %s19, 0
      %p102 = por %p100, %p101
      %p103 = scmp.ne.s32.totalorder %s95, %s97
      %p104 = scmp.eq.s32.totalorder %s24, 1
      %p105 = por %p103, %p104
      %p106 = scmp.ne.s32.totalorder %s97, %s98
      %p107 = scmp.eq.s32.totalorder %s24, 0
      %p108 = por %p106, %p107
      %p109 = scmp.ne.s32.totalorder %s97, %s98
      %p110 = scmp.eq.s32.totalorder %s25, 1
      %p111 = por %p109, %p110
      %p113 = scmp.ne.s32.totalorder %s98, %s112
      %p114 = scmp.eq.s32.totalorder %s25, 0
      %p115 = por %p113, %p114
      %s117 = sadd.s32 %s116, 1
      %p120 = scmp.eq.s32.totalorder %s19, 1
      %p121 = scmp.ne.s32.totalorder %s116, %s118
      %p122 = scmp.eq.s32.totalorder %s19, 0
      %p123 = por %p121, %p122
      %p124 = scmp.ne.s32.totalorder %s116, %s118
      %p125 = scmp.eq.s32.totalorder %s24, 1
      %p126 = por %p124, %p125
      %p127 = scmp.ne.s32.totalorder %s118, %s119
      %p128 = scmp.eq.s32.totalorder %s24, 0
      %p129 = por %p127, %p128
      %p130 = scmp.ne.s32.totalorder %s118, %s119
      %p131 = scmp.eq.s32.totalorder %s25, 1
      %p132 = por %p130, %p131
      %p134 = scmp.ne.s32.totalorder %s119, %s133
      %p135 = scmp.eq.s32.totalorder %s25, 0
      %p136 = por %p134, %p135
      %s138 = sadd.s32 %s137, 1
      %p141 = scmp.eq.s32.totalorder %s19, 1
      %p142 = scmp.ne.s32.totalorder %s137, %s139
      %p143 = scmp.eq.s32.totalorder %s19, 0
      %p144 = por %p142, %p143
      %p145 = scmp.ne.s32.totalorder %s137, %s139
      %p146 = scmp.eq.s32.totalorder %s24, 1
      %p147 = por %p145, %p146
      %p148 = scmp.ne.s32.totalorder %s139, %s140
      %p149 = scmp.eq.s32.totalorder %s24, 0
      %p150 = por %p148, %p149
      %p151 = scmp.ne.s32.totalorder %s139, %s140
      %p152 = scmp.eq.s32.totalorder %s25, 1
      %p153 = por %p151, %p152
      %p155 = scmp.ne.s32.totalorder %s140, %s154
      %p156 = scmp.eq.s32.totalorder %s25, 0
      %p157 = por %p155, %p156
      %s158 = ssub.s32 %s19, %s26
      %p159 = scmp.eq.s32.totalorder %s158, 0
      %s161 = sadd.s32 %s160, 1
      %s162 = scalar_select %p159, %s160, %s161
      %p165 = pneg %p159
      %p166 = scmp.eq.s32.totalorder %s19, 1
      %p167 = por %p165, %p166
      %p168 = scmp.ne.s32.totalorder %s160, %s163
      %p169 = scmp.eq.s32.totalorder %s19, 0
      %p170 = por %p168, %p169
      %p171 = scmp.ne.s32.totalorder %s160, %s163
      %p172 = scmp.eq.s32.totalorder %s24, 1
      %p173 = por %p171, %p172
      %p174 = scmp.ne.s32.totalorder %s163, %s164
      %p175 = scmp.eq.s32.totalorder %s24, 0
      %p176 = por %p174, %p175
      %p177 = scmp.ne.s32.totalorder %s163, %s164
      %p178 = scmp.eq.s32.totalorder %s25, 1
      %p179 = por %p177, %p178
      %p181 = scmp.ne.s32.totalorder %s164, %s180
      %p182 = scmp.eq.s32.totalorder %s25, 0
      %p183 = por %p181, %p182
      %p184 = scmp.le.s32.totalorder 1, %s19
      %p185 = scmp.lt.s32.totalorder %s19, 3
      %p186 = pnand %p184, %p185
      %p187 = pneg %p186
      // Predicated region
      $region9: #{tpu_custom_call.1} parent=5 // pred_check
        _
      $region10: #{tpu_custom_call.1} parent=5 // pred_check_branch
        %189 = sbr.rel (%p186) target = $region12
      $region11: #{tpu_custom_call.1} parent=5 // pred_region
        %s190 = ssub.s32 %s19, 1
        // Predicated region
        $region13: #{tpu_custom_call.1} parent=11 // pred_check
          %p191 = pneg %p66
        $region14: #{tpu_custom_call.1} parent=11 // pred_check_branch
          %193 = sbr.rel (%p191) target = $region16
        $region15: #{tpu_custom_call.1} parent=11 // pred_region
          _
        $region16: #{tpu_custom_call.1} parent=11 // pred_fallthru
          _
        // Predicated region
        $region17: #{tpu_custom_call.1} parent=11 // pred_check
          %p194 = pneg %p87
        $region18: #{tpu_custom_call.1} parent=11 // pred_check_branch
          %196 = sbr.rel (%p194) target = $region20
        $region19: #{tpu_custom_call.1} parent=11 // pred_region
          _
        $region20: #{tpu_custom_call.1} parent=11 // pred_fallthru
          _
        // Predicated region
        $region21: #{tpu_custom_call.1} parent=11 // pred_check
          %p197 = pneg %p108
        $region22: #{tpu_custom_call.1} parent=11 // pred_check_branch
          %199 = sbr.rel (%p197) target = $region24
        $region23: #{tpu_custom_call.1} parent=11 // pred_region
          %201 = vsyncadd [#allocation6], 0
          %s202 = sshll.u32 %s3, 4
          %s203 = int_to_ptr.hbm [resolvable:$true] %s202
          %s204 = sshll.u32 [#allocation5], 4
          %s205 = int_to_ptr.vmem [resolvable:$true] %s204
          %210 = dma.hbm_to_vmem [thread:$0]  %s203, 2304, %s205, [#allocation6], 256, 256, 16
        $region24: #{tpu_custom_call.1} parent=11 // pred_fallthru
          _
        // Predicated region
        $region25: #{tpu_custom_call.1} parent=11 // pred_check
          %p211 = pneg %p129
        $region26: #{tpu_custom_call.1} parent=11 // pred_check_branch
          %213 = sbr.rel (%p211) target = $region28
        $region27: #{tpu_custom_call.1} parent=11 // pred_region
          _
        $region28: #{tpu_custom_call.1} parent=11 // pred_fallthru
          _
        // Predicated region
        $region29: #{tpu_custom_call.1} parent=11 // pred_check
          %p214 = pneg %p150
        $region30: #{tpu_custom_call.1} parent=11 // pred_check_branch
          %216 = sbr.rel (%p214) target = $region32
        $region31: #{tpu_custom_call.1} parent=11 // pred_region
          _
        $region32: #{tpu_custom_call.1} parent=11 // pred_fallthru
          _
      $region12: #{tpu_custom_call.1} parent=5 // pred_fallthru
        _
      %p217 = scmp.lt.s32.totalorder %s19, 2
      // Predicated region
      $region33: #{tpu_custom_call.1} parent=5 // pred_check
        %p218 = pneg %p217
      $region34: #{tpu_custom_call.1} parent=5 // pred_check_branch
        %220 = sbr.rel (%p218) target = $region36
      $region35: #{tpu_custom_call.1} parent=5 // pred_region
        // Predicated region
        $region37: #{tpu_custom_call.1} parent=35 // pred_check
          %p221 = pneg %p39
        $region38: #{tpu_custom_call.1} parent=35 // pred_check_branch
          %223 = sbr.rel (%p221) target = $region40
        $region39: #{tpu_custom_call.1} parent=35 // pred_region
          %s224 = sand.u32 %s29, 1
          %s225 = scalar_lea.sflag [#allocation3], %s224
          %s226 = sand.u32 %s29, 1
          %s227 = smul.addr %s226, 16
          %s228 = scalar_lea.vmem [#allocation2], %s227
          %230 = vsyncadd %s225, 0
          %s231 = smul.addr %s19, 2
          %s232 = smul.addr %s231, 8
          %s233 = scalar_lea.hbm %s0, %s232
          %s235 = sshll.u32 %s233, 4
          %s236 = int_to_ptr.hbm [resolvable:$true] %s235
          %s237 = sshll.u32 %s228, 4
          %s238 = int_to_ptr.vmem [resolvable:$true] %s237
          %240 = dma.hbm_to_vmem [thread:$0]  %s236, 256, %s238, %s225
        $region40: #{tpu_custom_call.1} parent=35 // pred_fallthru
          _
      $region36: #{tpu_custom_call.1} parent=5 // pred_fallthru
        _
      %p241 = scmp.le.s32.totalorder 1, %s19
      %p242 = scmp.lt.s32.totalorder %s19, 3
      %p243 = pnand %p241, %p242
      %p244 = pneg %p243
      // Predicated region
      $region41: #{tpu_custom_call.1} parent=5 // pred_check
        _
      $region42: #{tpu_custom_call.1} parent=5 // pred_check_branch
        %246 = sbr.rel (%p243) target = $region44
      $region43: #{tpu_custom_call.1} parent=5 // pred_region
        %s247 = ssub.s32 %s19, 1
        %s248 = sand.u32 %s32, 1
        %s249 = scalar_lea.sflag [#allocation3], %s248
        %s250 = sand.u32 %s32, 1
        %s251 = smul.addr %s250, 16
        %s252 = scalar_lea.vmem [#allocation2], %s251
        // Predicated region
        $region45: #{tpu_custom_call.1} parent=43 // pred_check
          %p253 = pneg %p45
        $region46: #{tpu_custom_call.1} parent=43 // pred_check_branch
          %255 = sbr.rel (%p253) target = $region48
        $region47: #{tpu_custom_call.1} parent=43 // pred_region
          %257 = dma.done %s249, 256
        $region48: #{tpu_custom_call.1} parent=43 // pred_fallthru
          _
        // Predicated region
        $region49: #{tpu_custom_call.1} parent=43 // pred_check
          %p258 = pneg %p108
        $region50: #{tpu_custom_call.1} parent=43 // pred_check_branch
          %260 = sbr.rel (%p258) target = $region52
        $region51: #{tpu_custom_call.1} parent=43 // pred_region
          %262 = dma.done [#allocation6], 2304
        $region52: #{tpu_custom_call.1} parent=43 // pred_fallthru
          _
        %s263 = sand.u32 %s32, 1
        %s264 = scalar_lea.sflag [#allocation3], %s263
        %s265 = sand.u32 %s32, 1
        %s266 = smul.addr %s265, 16
        %s267 = scalar_lea.vmem [#allocation2], %s266
        %p268 = pneg %p45
        %p269 = pneg %p42
        %p270 = pneg %p66
        %p271 = pneg %p63
        %p272 = pneg %p87
        %p273 = pneg %p84
        %p274 = pneg %p108
        %p275 = pneg %p105
        %p276 = pneg %p129
        %p277 = pneg %p126
        %p278 = pneg %p150
        %p279 = pneg %p147
        %p280 = pneg %p176
        %p281 = pneg %p173
        %s282 = sand.u32 %s163, 1
        %s283 = scalar_lea.sflag [#allocation4], %s282
        %s284 = sand.u32 %s163, 1
        %s285 = smul.addr %s284, 8
        %s286 = scalar_lea.vmem [#allocation7], %s285
        %v288 = vld [vmem:[%s4] sm:$0xff]
        %290 = vset.pattern.permute.xlu0 0
        %291 = vperm.xlu0 %290, %v288
        %v292 = vpop.permute.xlu0 %291
        %v294 = vld [vmem:[%s5] sm:$0xff]
        %296 = vset.pattern.permute.xlu0 0
        %297 = vperm.xlu0 %296, %v294
        %v298 = vpop.permute.xlu0 %297
        %v300 = vld [vmem:[%s252] sm:$0xff]
        %v301 = vld [vmem:[%s252 + $0x8] sm:$0xff]
        %v302 = vld [vmem:[%s1] sm:$0xf]
        %v303 = vld [vmem:[%s1 + $0x4] sm:$0xf]
        %304 = vrot.lane.b32.xlu0 %v300, 17
        %v305 = vpop.permute.xlu0 %304
        %306 = vrot.lane.b32.xlu0 %v301, 17
        %v307 = vpop.permute.xlu0 %306
        %v308 = vlaneseq
        %v309 = vand.u32 %v308, 127
        %vm310 = vcmp.lt.s32.totalorder %v309, 17
        %v311 = vsel %vm310, %v305, %v307
        %v312 = vsel %vm310, %v307, %v305
        %313 = vrot.lane.b32.xlu0 %v300, 16
        %v314 = vpop.permute.xlu0 %313
        %315 = vrot.lane.b32.xlu0 %v301, 16
        %v316 = vpop.permute.xlu0 %315
        %vm317 = vcmp.lt.s32.totalorder %v309, 16
        %v318 = vsel %vm317, %v314, %v316
        %v319 = vsel %vm317, %v316, %v314
        %320 = vrot.lane.b32.xlu0 %v300, 15
        %v321 = vpop.permute.xlu0 %320
        %322 = vrot.lane.b32.xlu0 %v301, 15
        %v323 = vpop.permute.xlu0 %322
        %vm324 = vcmp.lt.s32.totalorder %v309, 15
        %v325 = vsel %vm324, %v321, %v323
        %v326 = vsel %vm324, %v323, %v321
        %327 = vrot.lane.b32.xlu0 %v300, 1
        %v328 = vpop.permute.xlu0 %327
        %329 = vrot.lane.b32.xlu0 %v301, 1
        %v330 = vpop.permute.xlu0 %329
        %vm331 = vcmp.lt.s32.totalorder %v309, 1
        %v332 = vsel %vm331, %v328, %v330
        %v333 = vsel %vm331, %v330, %v328
        %334 = vrot.lane.b32.xlu0 %v300, 127
        %v335 = vpop.permute.xlu0 %334
        %336 = vrot.lane.b32.xlu0 %v301, 127
        %v337 = vpop.permute.xlu0 %336
        %vm338 = vcmp.lt.s32.totalorder %v309, 127
        %v339 = vsel %vm338, %v335, %v337
        %v340 = vsel %vm338, %v337, %v335
        %341 = vrot.lane.b32.xlu0 %v300, 113
        %v342 = vpop.permute.xlu0 %341
        %343 = vrot.lane.b32.xlu0 %v301, 113
        %v344 = vpop.permute.xlu0 %343
        %vm345 = vcmp.lt.s32.totalorder %v309, 113
        %v346 = vsel %vm345, %v342, %v344
        %v347 = vsel %vm345, %v344, %v342
        %348 = vrot.lane.b32.xlu0 %v300, 112
        %v349 = vpop.permute.xlu0 %348
        %350 = vrot.lane.b32.xlu0 %v301, 112
        %v351 = vpop.permute.xlu0 %350
        %vm352 = vcmp.lt.s32.totalorder %v309, 112
        %v353 = vsel %vm352, %v349, %v351
        %v354 = vsel %vm352, %v351, %v349
        %355 = vrot.lane.b32.xlu0 %v300, 111
        %v356 = vpop.permute.xlu0 %355
        %357 = vrot.lane.b32.xlu0 %v301, 111
        %v358 = vpop.permute.xlu0 %357
        %vm359 = vcmp.lt.s32.totalorder %v309, 111
        %v360 = vsel %vm359, %v356, %v358
        %v361 = vsel %vm359, %v358, %v356
        %v362 = vld [vmem:[#allocation5] sm:$0xff]
        %v363 = vld [vmem:[#allocation5 + $0x8] sm:$0xff]
        %v364 = vld [vmem:[#allocation5 + $0x10] sm:$0xff]
        %v365 = vld [vmem:[#allocation5 + $0x18] sm:$0xff]
        %v366 = vld [vmem:[#allocation5 + $0x20] sm:$0xff]
        %v367 = vld [vmem:[#allocation5 + $0x28] sm:$0xff]
        %v368 = vld [vmem:[#allocation5 + $0x30] sm:$0xff]
        %v369 = vld [vmem:[#allocation5 + $0x38] sm:$0xff]
        %v370 = vld [vmem:[#allocation5 + $0x40] sm:$0xff]
        %v371 = vld [vmem:[#allocation5 + $0x48] sm:$0xff]
        %v372 = vld [vmem:[#allocation5 + $0x50] sm:$0xff]
        %v373 = vld [vmem:[#allocation5 + $0x58] sm:$0xff]
        %v374 = vld [vmem:[#allocation5 + $0x60] sm:$0xff]
        %v375 = vld [vmem:[#allocation5 + $0x68] sm:$0xff]
        %v376 = vld [vmem:[#allocation5 + $0x70] sm:$0xff]
        %v377 = vld [vmem:[#allocation5 + $0x78] sm:$0xff]
        %v378 = vld [vmem:[#allocation5 + $0x80] sm:$0xff]
        %v379 = vld [vmem:[#allocation5 + $0x88] sm:$0xff]
        %v380 = vmul.f32 %v312, %v362
        %v381 = vmul.f32 %v311, %v363
        %v382 = vmul.f32 %v319, %v364
        %v383 = vmul.f32 %v318, %v365
        %v384 = vmul.f32 %v326, %v366
        %v385 = vmul.f32 %v325, %v367
        %v386 = vmul.f32 %v333, %v368
        %v387 = vmul.f32 %v332, %v369
        %v388 = vmul.f32 %v300, %v370
        %v389 = vmul.f32 %v301, %v371
        %v390 = vmul.f32 %v339, %v372
        %v391 = vmul.f32 %v340, %v373
        %v392 = vmul.f32 %v346, %v374
        %v393 = vmul.f32 %v347, %v375
        %v394 = vmul.f32 %v353, %v376
        %v395 = vmul.f32 %v354, %v377
        %v396 = vmul.f32 %v360, %v378
        %v397 = vmul.f32 %v361, %v379
        %v398 = vpack.c.bf16 %v382, %v380
        %v399 = vpack.c.bf16 %v383, %v381
        %v400 = vpack.c.bf16 %v386, %v384
        %v401 = vpack.c.bf16 %v387, %v385
        %v402 = vpack.c.bf16 %v390, %v388
        %v403 = vpack.c.bf16 %v391, %v389
        %v404 = vpack.c.bf16 %v394, %v392
        %v405 = vpack.c.bf16 %v395, %v393
        %v406 = vpack.c.bf16 %v396, %v396
        %v407 = vpack.c.bf16 %v397, %v397
        %v410 = vunpack.c.l.b16 %v302
        %v411 = vunpack.c.l.b16 %v303
        %v412 = vpack.c.b16 %v411, %v410
        %vm413 = vcmask 588800
        %v415 = vsel %vm413, %v412, 0
        %vm417 = vcmask 1043456
        %v419 = vsel %vm417, %v406, 0
        %v422 = vsel %vm417, %v407, 0
        %424 = vmatpush.bf16.msra.mxu0 0
        %425 = vmatpush.bf16.msra.mxu0 0
        %426 = vmatpush.bf16.msra.mxu0 0
        %427 = vmatpush.bf16.msra.mxu0 %v419
        %428 = vmatpush.bf16.msra.mxu0 %v404
        %429 = vmatpush.bf16.msra.mxu0 %v402
        %430 = vmatpush.bf16.msra.mxu0 %v400
        %431 = vmatpush.bf16.msra.mxu0 %v398
        %432 = vmatmul.bf16.gmra.mxu0 %v415
        %v433 = vpop.f32.mrf.mxu0
        %v434 = vadd.f32 0.0, %v433
        %v435 = vpop.f32.mrf.mxu0
        %v436 = vadd.f32 0.0, %v435
        %437 = vdwg.mxu0
        %438 = vmatpush.bf16.msra.mxu0 0
        %439 = vmatpush.bf16.msra.mxu0 0
        %440 = vmatpush.bf16.msra.mxu0 0
        %441 = vmatpush.bf16.msra.mxu0 %v422
        %442 = vmatpush.bf16.msra.mxu0 %v405
        %443 = vmatpush.bf16.msra.mxu0 %v403
        %444 = vmatpush.bf16.msra.mxu0 %v401
        %445 = vmatpush.bf16.msra.mxu0 %v399
        %446 = vmatmul.bf16.gmra.mxu0 %v415
        %v447 = vpop.f32.mrf.mxu0
        %v448 = vadd.f32 0.0, %v447
        %v449 = vpop.f32.mrf.mxu0
        %v450 = vadd.f32 0.0, %v449
        %451 = vdwg.mxu0
        %v452 = vadd.f32 %v434, %v292
        %v453 = vadd.f32 %v448, %v292
        %v454 = vmax.f32 %v452, 0.0
        %v455 = vmax.f32 %v453, 0.0
        %v456 = vld [vmem:[%s2] sm:$0xf]
        %457 = vrot.lane.b32.xlu0 %v454, 17
        %v458 = vpop.permute.xlu0 %457
        %459 = vrot.lane.b32.xlu0 %v455, 17
        %v460 = vpop.permute.xlu0 %459
        %v461 = vsel %vm310, %v458, %v460
        %v462 = vsel %vm310, %v460, %v458
        %463 = vrot.lane.b32.xlu0 %v454, 16
        %v464 = vpop.permute.xlu0 %463
        %465 = vrot.lane.b32.xlu0 %v455, 16
        %v466 = vpop.permute.xlu0 %465
        %v467 = vsel %vm317, %v464, %v466
        %v468 = vsel %vm317, %v466, %v464
        %469 = vrot.lane.b32.xlu0 %v454, 15
        %v470 = vpop.permute.xlu0 %469
        %471 = vrot.lane.b32.xlu0 %v455, 15
        %v472 = vpop.permute.xlu0 %471
        %v473 = vsel %vm324, %v470, %v472
        %v474 = vsel %vm324, %v472, %v470
        %475 = vrot.lane.b32.xlu0 %v454, 1
        %v476 = vpop.permute.xlu0 %475
        %477 = vrot.lane.b32.xlu0 %v455, 1
        %v478 = vpop.permute.xlu0 %477
        %v479 = vsel %vm331, %v476, %v478
        %v480 = vsel %vm331, %v478, %v476
        %481 = vrot.lane.b32.xlu0 %v454, 127
        %v482 = vpop.permute.xlu0 %481
        %483 = vrot.lane.b32.xlu0 %v455, 127
        %v484 = vpop.permute.xlu0 %483
        %v485 = vsel %vm338, %v482, %v484
        %v486 = vsel %vm338, %v484, %v482
        %487 = vrot.lane.b32.xlu0 %v454, 113
        %v488 = vpop.permute.xlu0 %487
        %489 = vrot.lane.b32.xlu0 %v455, 113
        %v490 = vpop.permute.xlu0 %489
        %v491 = vsel %vm345, %v488, %v490
        %v492 = vsel %vm345, %v490, %v488
        %493 = vrot.lane.b32.xlu0 %v454, 112
        %v494 = vpop.permute.xlu0 %493
        %495 = vrot.lane.b32.xlu0 %v455, 112
        %v496 = vpop.permute.xlu0 %495
        %v497 = vsel %vm352, %v494, %v496
        %v498 = vsel %vm352, %v496, %v494
        %499 = vrot.lane.b32.xlu0 %v454, 111
        %v500 = vpop.permute.xlu0 %499
        %501 = vrot.lane.b32.xlu0 %v455, 111
        %v502 = vpop.permute.xlu0 %501
        %v503 = vsel %vm359, %v500, %v502
        %v504 = vsel %vm359, %v502, %v500
        %v505 = vmul.f32 %v462, %v362
        %v506 = vmul.f32 %v461, %v363
        %v507 = vmul.f32 %v468, %v364
        %v508 = vmul.f32 %v467, %v365
        %v509 = vmul.f32 %v474, %v366
        %v510 = vmul.f32 %v473, %v367
        %v511 = vmul.f32 %v480, %v368
        %v512 = vmul.f32 %v479, %v369
        %v513 = vmul.f32 %v454, %v370
        %v514 = vmul.f32 %v455, %v371
        %v515 = vmul.f32 %v485, %v372
        %v516 = vmul.f32 %v486, %v373
        %v517 = vmul.f32 %v491, %v374
        %v518 = vmul.f32 %v492, %v375
        %v519 = vmul.f32 %v497, %v376
        %v520 = vmul.f32 %v498, %v377
        %v521 = vmul.f32 %v503, %v378
        %v522 = vmul.f32 %v504, %v379
        %v523 = vpack.c.bf16 %v507, %v505
        %v524 = vpack.c.bf16 %v508, %v506
        %v525 = vpack.c.bf16 %v511, %v509
        %v526 = vpack.c.bf16 %v512, %v510
        %v527 = vpack.c.bf16 %v515, %v513
        %v528 = vpack.c.bf16 %v516, %v514
        %v529 = vpack.c.bf16 %v519, %v517
        %v530 = vpack.c.bf16 %v520, %v518
        %v531 = vpack.c.bf16 %v521, %v521
        %v532 = vpack.c.bf16 %v522, %v522
        %v534 = vsel %vm413, %v456, 0
        %v537 = vsel %vm417, %v531, 0
        %v540 = vsel %vm417, %v532, 0
        %542 = vmatpush.bf16.msra.mxu0 0
        %543 = vmatpush.bf16.msra.mxu0 0
        %544 = vmatpush.bf16.msra.mxu0 0
        %545 = vmatpush.bf16.msra.mxu0 %v537
        %546 = vmatpush.bf16.msra.mxu0 %v529
        %547 = vmatpush.bf16.msra.mxu0 %v527
        %548 = vmatpush.bf16.msra.mxu0 %v525
        %549 = vmatpush.bf16.msra.mxu0 %v523
        %550 = vmatmul.bf16.gmra.mxu0 %v534
        %v551 = vpop.f32.mrf.mxu0
        %v552 = vadd.f32 %v298, %v551
        %v553 = vpop.f32.mrf.mxu0
        %554 = vdwg.mxu0
        %555 = vmatpush.bf16.msra.mxu0 0
        %556 = vmatpush.bf16.msra.mxu0 0
        %557 = vmatpush.bf16.msra.mxu0 0
        %558 = vmatpush.bf16.msra.mxu0 %v540
        %559 = vmatpush.bf16.msra.mxu0 %v530
        %560 = vmatpush.bf16.msra.mxu0 %v528
        %561 = vmatpush.bf16.msra.mxu0 %v526
        %562 = vmatpush.bf16.msra.mxu0 %v524
        %563 = vmatmul.bf16.gmra.mxu0 %v534
        %v564 = vpop.f32.mrf.mxu0
        %v565 = vadd.f32 %v298, %v564
        %v566 = vpop.f32.mrf.mxu0
        %567 = vdwg.mxu0
        %v568 = vadd.f32 %v552, %v436
        %v569 = vadd.f32 %v565, %v450
        %v570 = vmax.f32 %v568, 0.0
        %v571 = vmax.f32 %v569, 0.0
        %v572 = vpack.c.bf16 %v571, %v570
        %573 = vst [vmem:[%s286] sm:$0xff] %v572
        %s574 = sand.u32 %s163, 1
        %s575 = scalar_lea.sflag [#allocation4], %s574
        %s576 = sand.u32 %s163, 1
        %s577 = smul.addr %s576, 8
        %s578 = scalar_lea.vmem [#allocation7], %s577
        // Predicated region
        $region53: #{tpu_custom_call.1} parent=43 // pred_check
          %p579 = pneg %p173
        $region54: #{tpu_custom_call.1} parent=43 // pred_check_branch
          %581 = sbr.rel (%p579) target = $region56
        $region55: #{tpu_custom_call.1} parent=43 // pred_region
          %583 = vsyncadd %s575, 0
          %s584 = smul.addr %s24, 2
          %s585 = smul.addr %s584, 4
          %s586 = scalar_lea.hbm %s6, %s585
          %s588 = sshll.u32 %s578, 4
          %s589 = int_to_ptr.vmem [resolvable:$true] %s588
          %s590 = sshll.u32 %s586, 4
          %s591 = int_to_ptr.hbm [resolvable:$true] %s590
          %593 = dma.vmem_to_hbm [thread:$0]  %s589, 128, %s591, %s575
        $region56: #{tpu_custom_call.1} parent=43 // pred_fallthru
          _
      $region44: #{tpu_custom_call.1} parent=5 // pred_fallthru
        _
      %p594 = scmp.le.s32.totalorder 2, %s19
      // Predicated region
      $region57: #{tpu_custom_call.1} parent=5 // pred_check
        %p595 = pneg %p594
      $region58: #{tpu_custom_call.1} parent=5 // pred_check_branch
        %597 = sbr.rel (%p595) target = $region60
      $region59: #{tpu_custom_call.1} parent=5 // pred_region
        %s598 = ssub.s32 %s19, 2
        // Predicated region
        $region61: #{tpu_custom_call.1} parent=59 // pred_check
          %p599 = pneg %p179
        $region62: #{tpu_custom_call.1} parent=59 // pred_check_branch
          %601 = sbr.rel (%p599) target = $region64
        $region63: #{tpu_custom_call.1} parent=59 // pred_region
          %s602 = sand.u32 %s164, 1
          %s603 = scalar_lea.sflag [#allocation4], %s602
          %s604 = sand.u32 %s164, 1
          %s605 = smul.addr %s604, 8
          %s606 = scalar_lea.vmem [#allocation7], %s605
          %608 = dma.done %s603, 128
        $region64: #{tpu_custom_call.1} parent=59 // pred_fallthru
          _
      $region60: #{tpu_custom_call.1} parent=5 // pred_fallthru
        _
    $region6: #{tpu_custom_call.1} parent=1 // loop_footer
      %s23 = sadd.s32 1, %s19
    $region7: #{tpu_custom_call.1} parent=1 // loop_footer_branch
      %18 = sbr.rel target = $region3
    $region8: #{tpu_custom_call.1} parent=1 // loop_exit
      _
    %609 = vsyncpa [#allocation3], 1
    %s610 = scalar_lea.sflag [#allocation3], 1
    %611 = vsyncpa %s610, 1
    %612 = vsyncpa [#allocation6], 1
    %613 = vsyncpa [#allocation4], 1
    %s614 = scalar_lea.sflag [#allocation4], 1
    %615 = vsyncpa %s614, 1

</llo_original>
